<compile_context>
chip_gen: v5e
topology: v5e:2x2
jax: 0.10.0
libtpu: 0.0.40
codegen_flags: <defaults>
</compile_context>

<pallas_src>
import functools

import jax
import jax.numpy as jnp
from jax import lax
from jax.experimental import pallas as pl
from jax.experimental.pallas import tpu as pltpu

EPS = 1e-8  # torch.nn.CosineSimilarity default eps

_VMEM_BLOCK_BUDGET = 12 << 20   # target double-buffered per-step block footprint
_VMEM_LIMIT_BYTES = 32 << 20    # scoped VMEM limit (<= physical on v5e/v6e/v7x)


# ----------------------------------------------------------------------------
# Host-side tile sizing (layout-padding + double-buffering aware)
# ----------------------------------------------------------------------------
def _round_up(x, m):
    return ((x + m - 1) // m) * m


def _sublane_multiple(dtype):
    # f32 -> 8, bf16 -> 16, int8 -> 32 rows per vreg sublane group
    return max(8, 32 // jnp.dtype(dtype).itemsize)


def _padded_block_bytes(shape, dtype):
    """VMEM footprint of one block: last dim padded to 128 lanes, second-to-last
    padded to the dtype's sublane packing."""
    itemsize = jnp.dtype(dtype).itemsize
    sub = _sublane_multiple(dtype)
    shape = tuple(int(s) for s in shape)
    if len(shape) == 1:
        shape = (1,) + shape
    lead = 1
    for d in shape[:-2]:
        lead *= d
    return lead * _round_up(shape[-2], sub) * _round_up(shape[-1], 128) * itemsize


def _pick_batch_tile(batch, row_specs, cap=None):
    """row_specs: list of (per-row block shape without the batch dim, dtype).
    Largest batch tile (multiple of the widest sublane packing) whose
    double-buffered, layout-padded footprint fits the VMEM budget."""
    sub = max(_sublane_multiple(d) for _, d in row_specs)

    def footprint(tb):
        return 2 * sum(_padded_block_bytes((tb,) + tuple(s), d) for s, d in row_specs)

    tb = _round_up(int(batch), sub)
    if cap is not None:
        tb = min(tb, max(sub, (int(cap) // sub) * sub))
    while tb > sub and footprint(tb) > _VMEM_BLOCK_BUDGET:
        tb = max(sub, (tb // 2 // sub) * sub)
    return tb


def _compiler_params():
    return pltpu.CompilerParams(dimension_semantics=("parallel",),
                                vmem_limit_bytes=_VMEM_LIMIT_BYTES)


# ----------------------------------------------------------------------------
# In-kernel math blocks (f32 compute regardless of input dtype)
# ----------------------------------------------------------------------------
def _ngh_similarity_block(emb, ngh, mask, kind):
    """emb: (tb, D), ngh: (tb, N, D), mask: (tb, N) int32 or None -> (tb, N) f32."""
    emb32 = emb.astype(jnp.float32)
    ngh32 = ngh.astype(jnp.float32)
    # VPU multiply + cross-lane reduce; ngh32 loaded once, reused for the norm.
    dots = jnp.sum(emb32[:, None, :] * ngh32, axis=-1)               # (tb, N)
    if kind == "cos":
        sq = (jnp.sum(emb32 * emb32, axis=-1, keepdims=True)         # (tb, 1)
              * jnp.sum(ngh32 * ngh32, axis=-1))                     # (tb, N)
        # one rsqrt + one mul instead of 2x sqrt + divide
        # NOTE: clamps the *product* of squared norms at EPS^2 (matches the
        # in-file reference; differs slightly from torch's per-norm clamp).
        sim = dots * lax.rsqrt(jnp.maximum(sq, EPS * EPS))
        if mask is not None:
            sim = jnp.where(mask != 0, -1.0, sim)
        return (sim + 1.0) * 0.5
    else:  # "sigcos"
        s = dots
        if mask is not None:
            s = jnp.where(mask != 0, -jnp.inf, s)
        return jax.nn.sigmoid(s)


def _pair_row_term(emb, old, w, kind):
    """Per-row similarity term, (tb, 1) f32 (batch mean + cos rescale happen outside)."""
    emb = emb.astype(jnp.float32)
    old = old.astype(jnp.float32)
    if kind == "cos":
        dots = jnp.sum(emb * old, axis=-1, keepdims=True)
        sq = (jnp.sum(emb * emb, axis=-1, keepdims=True)
              * jnp.sum(old * old, axis=-1, keepdims=True))
        sim = dots * lax.rsqrt(jnp.maximum(sq, EPS * EPS))
        if w is not None:
            sim = sim * w.astype(jnp.float32)
        return sim
    else:  # "sigcos"
        prod = emb * old
        if w is not None:
            prod = prod * w.astype(jnp.float32)
        return jax.nn.sigmoid(jnp.sum(prod, axis=-1, keepdims=True))


def _distribution_block(new_d, old_d, kind):
    new_d = new_d.astype(jnp.float32)
    old_d = old_d.astype(jnp.float32)
    if kind == "KLDiv":
        new_lp = jax.nn.log_softmax(new_d, axis=-1)
        old_lp = jax.nn.log_softmax(old_d, axis=-1)
        return jnp.exp(old_lp) * (old_lp - new_lp)
    else:  # "MSE"
        d = new_d - old_d
        return d * d


# ----------------------------------------------------------------------------
# Kernels (all fully parallel over the batch grid axis; ragged last block OK
# because every computation is row-local and OOB stores are dropped by Pallas)
# ----------------------------------------------------------------------------
def _ngh_kernel(*refs, kind, has_mask):
    if has_mask:
        emb_ref, ngh_ref, mask_ref, out_ref = refs
        mask = mask_ref[...]
    else:
        emb_ref, ngh_ref, out_ref = refs
        mask = None
    out_ref[...] = _ngh_similarity_block(emb_ref[...], ngh_ref[...], mask, kind)


def _pair_kernel(*refs, kind, has_weight):
    if has_weight:
        emb_ref, old_ref, w_ref, out_ref = refs
        w = w_ref[...]
    else:
        emb_ref, old_ref, out_ref = refs
        w = None
    out_ref[...] = _pair_row_term(emb_ref[...], old_ref[...], w, kind)


def _dist_kernel(new_ref, old_ref, out_ref, *, kind):
    out_ref[...] = _distribution_block(new_ref[...], old_ref[...], kind)


def _fused_pair_dist_kernel(*refs, sim_kind, dist_kind, has_weight):
    if has_weight:
        emb_ref, old_ref, w_ref, nd_ref, od_ref, sim_ref, diff_ref = refs
        w = w_ref[...]
    else:
        emb_ref, old_ref, nd_ref, od_ref, sim_ref, diff_ref = refs
        w = None
    sim_ref[...] = _pair_row_term(emb_ref[...], old_ref[...], w, sim_kind)
    diff_ref[...] = _distribution_block(nd_ref[...], od_ref[...], dist_kind)


# ----------------------------------------------------------------------------
# Cached pallas_call builders (one spec/trace per (shape, tile, kind))
# ----------------------------------------------------------------------------
@functools.lru_cache(maxsize=None)
def _build_ngh(B, N, D, tb, kind, has_mask):
    in_specs = [pl.BlockSpec((tb, D), lambda i: (i, 0)),
                pl.BlockSpec((tb, N, D), lambda i: (i, 0, 0))]
    if has_mask:
        in_specs.append(pl.BlockSpec((tb, N), lambda i: (i, 0)))
    call = pl.pallas_call(
        functools.partial(_ngh_kernel, kind=kind, has_mask=has_mask),
        grid=(pl.cdiv(B, tb),),
        in_specs=in_specs,
        out_specs=pl.BlockSpec((tb, N), lambda i: (i, 0)),
        out_shape=jax.ShapeDtypeStruct((B, N), jnp.float32),
        compiler_params=_compiler_params(),
    )
    return jax.jit(call)


@functools.lru_cache(maxsize=None)
def _build_pair(B, D, tb, kind, has_weight):
    in_specs = [pl.BlockSpec((tb, D), lambda i: (i, 0)),
                pl.BlockSpec((tb, D), lambda i: (i, 0))]
    if has_weight:
        in_specs.append(pl.BlockSpec((tb, 1), lambda i: (i, 0)))
    call = pl.pallas_call(
        functools.partial(_pair_kernel, kind=kind, has_weight=has_weight),
        grid=(pl.cdiv(B, tb),),
        in_specs=in_specs,
        out_specs=pl.BlockSpec((tb, 1), lambda i: (i, 0)),
        out_shape=jax.ShapeDtypeStruct((B, 1), jnp.float32),
        compiler_params=_compiler_params(),
    )

    def fn(*args):
        terms = call(*args)                    # (B, 1) per-row terms, exact B rows
        m = jnp.sum(terms) * (1.0 / B)         # tiny XLA reduce, fused in same jit
        if kind == "cos":
            m = (m + 1.0) * 0.5
        return m

    return jax.jit(fn)


@functools.lru_cache(maxsize=None)
def _build_dist(B, C, tb, kind):
    call = pl.pallas_call(
        functools.partial(_dist_kernel, kind=kind),
        grid=(pl.cdiv(B, tb),),
        in_specs=[pl.BlockSpec((tb, C), lambda i: (i, 0)),
                  pl.BlockSpec((tb, C), lambda i: (i, 0))],
        out_specs=pl.BlockSpec((tb, C), lambda i: (i, 0)),
        out_shape=jax.ShapeDtypeStruct((B, C), jnp.float32),
        compiler_params=_compiler_params(),
    )
    return jax.jit(call)


@functools.lru_cache(maxsize=None)
def _build_fused(B, D, C, tb, sim_kind, dist_kind, has_weight):
    in_specs = [pl.BlockSpec((tb, D), lambda i: (i, 0)),
                pl.BlockSpec((tb, D), lambda i: (i, 0))]
    if has_weight:
        in_specs.append(pl.BlockSpec((tb, 1), lambda i: (i, 0)))
    in_specs += [pl.BlockSpec((tb, C), lambda i: (i, 0)),
                 pl.BlockSpec((tb, C), lambda i: (i, 0))]
    call = pl.pallas_call(
        functools.partial(_fused_pair_dist_kernel, sim_kind=sim_kind,
                          dist_kind=dist_kind, has_weight=has_weight),
        grid=(pl.cdiv(B, tb),),
        in_specs=in_specs,
        out_specs=(pl.BlockSpec((tb, 1), lambda i: (i, 0)),
                   pl.BlockSpec((tb, C), lambda i: (i, 0))),
        out_shape=(jax.ShapeDtypeStruct((B, 1), jnp.float32),
                   jax.ShapeDtypeStruct((B, C), jnp.float32)),
        compiler_params=_compiler_params(),
    )

    def fn(*args):
        terms, diff = call(*args)
        m = jnp.sum(terms) * (1.0 / B)
        if sim_kind == "cos":
            m = (m + 1.0) * 0.5
        return m, diff

    return jax.jit(fn)


# ----------------------------------------------------------------------------
# Wrappers
# ----------------------------------------------------------------------------
def _ngh_call(emb, ngh_emb, mask, kind, max_tile):
    B, N, D = ngh_emb.shape
    emb2 = emb.reshape(B, D)                         # accept (B,D) or (B,1,D)
    has_mask = mask is not None
    row_specs = [((D,), emb2.dtype), ((N, D), ngh_emb.dtype), ((N,), jnp.float32)]
    args = [emb2, ngh_emb]
    if has_mask:
        row_specs.append(((N,), jnp.int32))
        args.append(jnp.asarray(mask).astype(jnp.int32).reshape(B, N))
    tb = _pick_batch_tile(B, row_specs, max_tile)
    return _build_ngh(B, N, D, tb, kind, has_mask)(*args)


def _pair_call(emb, old_emb, weight, kind, max_tile):
    B = emb.shape[0]
    D = emb.shape[-1]
    emb2 = emb.reshape(B, D)
    old2 = old_emb.reshape(B, D)
    has_w = weight is not None
    row_specs = [((D,), emb2.dtype), ((D,), old2.dtype), ((1,), jnp.float32)]
    args = [emb2, old2]
    if has_w:
        row_specs.append(((1,), jnp.float32))
        args.append(jnp.asarray(weight, jnp.float32).reshape(B, 1))
    tb = _pick_batch_tile(B, row_specs, max_tile)
    return _build_pair(B, D, tb, kind, has_w)(*args)


def _dist_call(new_d, old_d, kind, max_tile):
    B, C = new_d.shape
    row_specs = [((C,), new_d.dtype), ((C,), old_d.dtype), ((C,), jnp.float32)]
    tb = _pick_batch_tile(B, row_specs, max_tile)
    return _build_dist(B, C, tb, kind)(new_d, old_d)


def _fused_call(emb, old_emb, new_d, old_d, weight, sim_kind, dist_kind, max_tile):
    B = emb.shape[0]
    D = emb.shape[-1]
    C = new_d.shape[-1]
    emb2 = emb.reshape(B, D)
    old2 = old_emb.reshape(B, D)
    has_w = weight is not None
    row_specs = [((D,), emb2.dtype), ((D,), old2.dtype),
                 ((C,), new_d.dtype), ((C,), old_d.dtype),
                 ((1,), jnp.float32), ((C,), jnp.float32)]
    args = [emb2, old2]
    if has_w:
        row_specs.append(((1,), jnp.float32))
        args.append(jnp.asarray(weight, jnp.float32).reshape(B, 1))
    args += [new_d, old_d]
    tb = _pick_batch_tile(B, row_specs, max_tile)
    return _build_fused(B, D, C, tb, sim_kind, dist_kind, has_w)(*args)


# ----------------------------------------------------------------------------
# Module-level wrapper
# ----------------------------------------------------------------------------
class SSMPallas:
    """JAX/Pallas port of the tensor methods of SSM (similarity / distribution_difference).

    Inputs are streamed in their native dtype (feed bf16 embeddings to halve the
    HBM->VMEM DMA on v6e/v7x); all math accumulates in f32 inside the kernel.
    max_batch_tile optionally caps the batch tile (mainly for testing the
    multi-tile / ragged path); by default the tile is sized from the VMEM budget.
    """

    def __init__(self, similarity_function="cos", distribution_measure="KLDiv",
                 max_batch_tile=None):
        self.similarity_function = similarity_function
        self.distribution_measure = distribution_measure
        self.max_batch_tile = max_batch_tile

    def similarity(self, emb, old_emb=None, ngh_emb=None, weight=None, mask=None):
        if self.similarity_function == "mse":
            return None  # mirrors PyTorch: returns nothing
        if self.similarity_function not in ("cos", "sigcos"):
            return None
        if old_emb is not None:
            return _pair_call(emb, old_emb, weight, self.similarity_function,
                              self.max_batch_tile)
        if ngh_emb is not None:
            return _ngh_call(emb, ngh_emb, mask, self.similarity_function,
                             self.max_batch_tile)
        return None

    def distribution_difference(self, new_distribution, old_distribution):
        if self.distribution_measure not in ("KLDiv", "MSE"):
            raise ValueError(f"unknown distribution_measure {self.distribution_measure}")
        return _dist_call(new_distribution, old_distribution,
                          self.distribution_measure, self.max_batch_tile)

    def similarity_and_distribution_difference(self, emb, old_emb, new_distribution,
                                               old_distribution, weight=None):
        """Fused single-pallas_call version of pair similarity + distribution diff."""
        if self.similarity_function not in ("cos", "sigcos"):
            raise ValueError("fused path needs cos/sigcos similarity")
        return _fused_call(emb, old_emb, new_distribution, old_distribution, weight,
                           self.similarity_function, self.distribution_measure,
                           self.max_batch_tile)


# ----------------------------------------------------------------------------
# Pure-JAX references for verification
# ----------------------------------------------------------------------------
def _ref_cos_ngh(emb, ngh, mask):
    dots = jnp.sum(emb[:, None, :] * ngh, -1)
    den = jnp.maximum(jnp.linalg.norm(emb, axis=-1)[:, None]
                      * jnp.linalg.norm(ngh, axis=-1), EPS)
    sim = dots / den
    if mask is not None:
        sim = jnp.where(mask != 0, -1.0, sim)
    return (sim + 1.0) * 0.5


def _ref_sigcos_ngh(emb, ngh, mask):
    s = jnp.sum(emb[:, None, :] * ngh, -1)
    if mask is not None:
        s = jnp.where(mask != 0, -jnp.inf, s)
    return jax.nn.sigmoid(s)


def _ref_cos_pair(emb, old, w):
    dots = jnp.sum(emb * old, -1)
    den = jnp.maximum(jnp.linalg.norm(emb, axis=-1) * jnp.linalg.norm(old, axis=-1), EPS)
    sim = dots / den
    if w is not None:
        sim = sim * w.reshape(-1)
    return (jnp.mean(sim) + 1.0) * 0.5


def _ref_sigcos_pair(emb, old, w):
    prod = emb * old
    if w is not None:
        prod = prod * w.reshape(-1, 1)
    return jnp.mean(jax.nn.sigmoid(jnp.sum(prod, axis=1)))


def _ref_kldiv(new_d, old_d):
    nl = jax.nn.log_softmax(new_d, 1)
    ol = jax.nn.log_softmax(old_d, 1)
    return jnp.exp(ol) * (ol - nl)


if __name__ == "__main__":
    key = jax.random.PRNGKey(0)
    B, N, D, C = 8, 8, 32, 8
    ks = jax.random.split(key, 12)

    emb = jax.random.normal(ks[0], (B, D), jnp.float32)
    old_emb = jax.random.normal(ks[1], (B, D), jnp.float32)
    ngh_emb = jax.random.normal(ks[2], (B, N, D), jnp.float32)
    weight = jax.random.uniform(ks[3], (B,), jnp.float32)
    mask = (jax.random.uniform(ks[4], (B, N)) < 0.25).astype(jnp.int32)
    new_dist = jax.random.normal(ks[5], (B, C), jnp.float32)
    old_dist = jax.random.normal(ks[6], (B, C), jnp.float32)

    # cosine / KLDiv variant
    ssm_cos = SSMPallas("cos", "KLDiv")
    sim_ngh = jax.block_until_ready(ssm_cos.similarity(emb, ngh_emb=ngh_emb, mask=mask))
    sim_ngh_nm = jax.block_until_ready(ssm_cos.similarity(emb, ngh_emb=ngh_emb))
    sim_pair = jax.block_until_ready(ssm_cos.similarity(emb, old_emb=old_emb, weight=weight))
    sim_pair_nw = jax.block_until_ready(ssm_cos.similarity(emb, old_emb=old_emb))
    kld = jax.block_until_ready(ssm_cos.distribution_difference(new_dist, old_dist))
    fsim, fkld = jax.block_until_ready(
        ssm_cos.similarity_and_distribution_difference(emb, old_emb, new_dist, old_dist,
                                                       weight=weight))

    # sigcos / MSE variant
    ssm_sig = SSMPallas("sigcos", "MSE")
    sig_ngh = jax.block_until_ready(ssm_sig.similarity(emb, ngh_emb=ngh_emb, mask=mask))
    sig_pair = jax.block_until_ready(
        ssm_sig.similarity(emb, old_emb=old_emb, weight=weight.reshape(B, 1)))
    mse = jax.block_until_ready(ssm_sig.distribution_difference(new_dist, old_dist))

    # multi-tile / ragged path: grid > 1, B not a multiple of the tile (no padding)
    B2 = 20
    emb2 = jax.random.normal(ks[7], (B2, D), jnp.float32)
    old2 = jax.random.normal(ks[8], (B2, D), jnp.float32)
    ngh2 = jax.random.normal(ks[9], (B2, N, D), jnp.float32)
    nd2 = jax.random.normal(ks[10], (B2, C), jnp.float32)
    od2 = jax.random.normal(ks[11], (B2, C), jnp.float32)
    ssm_tiled = SSMPallas("cos", "KLDiv", max_batch_tile=8)
    t_ngh = jax.block_until_ready(ssm_tiled.similarity(emb2, ngh_emb=ngh2))
    t_pair = jax.block_until_ready(ssm_tiled.similarity(emb2, old_emb=old2))
    t_kld = jax.block_until_ready(ssm_tiled.distribution_difference(nd2, od2))
    tf_sim, tf_kld = jax.block_until_ready(
        ssm_tiled.similarity_and_distribution_difference(emb2, old2, nd2, od2))

    # verify against pure-JAX references (all-f32 VPU path -> tight tolerances)
    assert jnp.allclose(sim_ngh, _ref_cos_ngh(emb, ngh_emb, mask), atol=1e-4)
    assert jnp.allclose(sim_ngh_nm, _ref_cos_ngh(emb, ngh_emb, None), atol=1e-4)
    assert jnp.allclose(sig_ngh, _ref_sigcos_ngh(emb, ngh_emb, mask), atol=1e-4)
    assert jnp.allclose(t_ngh, _ref_cos_ngh(emb2, ngh2, None), atol=1e-4)

    assert jnp.allclose(sim_pair, _ref_cos_pair(emb, old_emb, weight), atol=1e-4)
    assert jnp.allclose(sim_pair_nw, _ref_cos_pair(emb, old_emb, None), atol=1e-4)
    assert jnp.allclose(sig_pair, _ref_sigcos_pair(emb, old_emb, weight), atol=1e-4)
    assert jnp.allclose(t_pair, _ref_cos_pair(emb2, old2, None), atol=1e-4)

    assert jnp.allclose(kld, _ref_kldiv(new_dist, old_dist), atol=1e-5)
    assert jnp.allclose(t_kld, _ref_kldiv(nd2, od2), atol=1e-5)
    assert jnp.allclose(mse, (new_dist - old_dist) ** 2, atol=1e-5)

    assert jnp.allclose(fsim, _ref_cos_pair(emb, old_emb, weight), atol=1e-4)
    assert jnp.allclose(fkld, _ref_kldiv(new_dist, old_dist), atol=1e-5)
    assert jnp.allclose(tf_sim, _ref_cos_pair(emb2, old2, None), atol=1e-4)
    assert jnp.allclose(tf_kld, _ref_kldiv(nd2, od2), atol=1e-5)

    print("KERNEL_OK")
</pallas_src>

<mosaic_0001>
module attributes {stable_mosaic.version = 11 : i64} {
  func.func @_ngh_kernel(%arg0: i32, %arg1: memref<8x32xf32, #tpu.memory_space<vmem>>, %arg2: memref<8x8x32xf32, #tpu.memory_space<vmem>>, %arg3: memref<8x8xi32, #tpu.memory_space<vmem>>, %arg4: memref<8x8xf32, #tpu.memory_space<vmem>>) attributes {dimension_semantics = [#tpu.dimension_semantics<parallel>], iteration_bounds = array<i64: 1>, scalar_prefetch = 0 : i64, scratch_operands = 0 : i64, tpu.core_type = #tpu.core_type<tc>, window_params = [{transform_indices = @transform_0, window_bounds = array<i64: 8, 32>}, {transform_indices = @transform_1, window_bounds = array<i64: 8, 8, 32>}, {transform_indices = @transform_2, window_bounds = array<i64: 8, 8>}, {transform_indices = @transform_3, window_bounds = array<i64: 8, 8>}]} {
    %c0 = arith.constant 0 : index
    %c0_0 = arith.constant 0 : index
    %0 = vector.load %arg3[%c0, %c0_0] : memref<8x8xi32, #tpu.memory_space<vmem>>, vector<8x8xi32>
    %c0_1 = arith.constant 0 : index
    %c0_2 = arith.constant 0 : index
    %1 = vector.load %arg1[%c0_1, %c0_2] : memref<8x32xf32, #tpu.memory_space<vmem>>, vector<8x32xf32>
    %c0_3 = arith.constant 0 : index
    %c0_4 = arith.constant 0 : index
    %c0_5 = arith.constant 0 : index
    %2 = vector.load %arg2[%c0_3, %c0_4, %c0_5] : memref<8x8x32xf32, #tpu.memory_space<vmem>>, vector<8x8x32xf32>
    %3 = vector.shape_cast %1 : vector<8x32xf32> to vector<8x1x32xf32>
    %4 = vector.broadcast %3 : vector<8x1x32xf32> to vector<8x8x32xf32>
    %5 = arith.mulf %4, %2 : vector<8x8x32xf32>
    %cst = arith.constant dense<0.000000e+00> : vector<8x8xf32>
    %6 = vector.multi_reduction <add>, %5, %cst [2] : vector<8x8x32xf32> to vector<8x8xf32>
    %7 = arith.mulf %1, %1 : vector<8x32xf32>
    %cst_6 = arith.constant dense<0.000000e+00> : vector<8xf32>
    %8 = vector.multi_reduction <add>, %7, %cst_6 [1] : vector<8x32xf32> to vector<8xf32>
    %9 = vector.shape_cast %8 : vector<8xf32> to vector<8x1xf32>
    %10 = arith.mulf %2, %2 : vector<8x8x32xf32>
    %cst_7 = arith.constant dense<0.000000e+00> : vector<8x8xf32>
    %11 = vector.multi_reduction <add>, %10, %cst_7 [2] : vector<8x8x32xf32> to vector<8x8xf32>
    %12 = vector.broadcast %9 : vector<8x1xf32> to vector<8x8xf32>
    %13 = arith.mulf %12, %11 : vector<8x8xf32>
    %cst_8 = arith.constant 1.000000e-16 : f32
    %14 = vector.broadcast %cst_8 : f32 to vector<8x8xf32>
    %15 = arith.maximumf %13, %14 : vector<8x8xf32>
    %16 = math.rsqrt %15 : vector<8x8xf32>
    %17 = arith.mulf %6, %16 : vector<8x8xf32>
    %c0_i32 = arith.constant 0 : i32
    %18 = vector.broadcast %c0_i32 : i32 to vector<8x8xi32>
    %19 = arith.cmpi ne, %0, %18 : vector<8x8xi32>
    %cst_9 = arith.constant -1.000000e+00 : f32
    %20 = vector.broadcast %cst_9 : f32 to vector<8x8xf32>
    %21 = arith.select %19, %20, %17 : vector<8x8xi1>, vector<8x8xf32>
    %cst_10 = arith.constant 1.000000e+00 : f32
    %22 = vector.broadcast %cst_10 : f32 to vector<8x8xf32>
    %23 = arith.addf %21, %22 : vector<8x8xf32>
    %cst_11 = arith.constant 5.000000e-01 : f32
    %24 = vector.broadcast %cst_11 : f32 to vector<8x8xf32>
    %25 = arith.mulf %23, %24 : vector<8x8xf32>
    %c0_12 = arith.constant 0 : index
    %c0_13 = arith.constant 0 : index
    %26 = vector.load %arg4[%c0_12, %c0_13] : memref<8x8xf32, #tpu.memory_space<vmem>>, vector<8x8xf32>
    tpu.vector_store %arg4[%c0_12, %c0_13], %25 {strides = array<i32>} : memref<8x8xf32, #tpu.memory_space<vmem>>, vector<8x8xf32>,
    return
  }
  func.func @transform_0(%arg0: i32) -> (i32, i32) {
    %c0_i32 = arith.constant 0 : i32
    %c0_i32_0 = arith.constant 0 : i32
    return %arg0, %c0_i32 : i32, i32
  }
  func.func @transform_1(%arg0: i32) -> (i32, i32, i32) {
    %c0_i32 = arith.constant 0 : i32
    %c0_i32_0 = arith.constant 0 : i32
    %c0_i32_1 = arith.constant 0 : i32
    return %arg0, %c0_i32, %c0_i32_0 : i32, i32, i32
  }
  func.func @transform_2(%arg0: i32) -> (i32, i32) {
    %c0_i32 = arith.constant 0 : i32
    %c0_i32_0 = arith.constant 0 : i32
    return %arg0, %c0_i32 : i32, i32
  }
  func.func @transform_3(%arg0: i32) -> (i32, i32) {
    %c0_i32 = arith.constant 0 : i32
    %c0_i32_0 = arith.constant 0 : i32
    return %arg0, %c0_i32 : i32, i32
  }
}

</mosaic_0001>

<llo_original>
// kernel: tpu_custom_call.1
$region0: #{tpu_custom_call.1}
  #allocation0 [shape = 'u32[]', space=smem, size = 0x4, offset = 0x4, fixed_abs, tag = 'smem constant byte address 0x4 - core index']
  #allocation1 [shape = 'u32[72,128]{1,0:T(1,128)}', space=vmem, size = 0x9000, scoped, tag = 'internal scratch']
  %s0 = inlined_call_operand.hbm [shape: f32[8,32], index: 0, kind: input, shape index: {}]
  %s1 = inlined_call_operand.hbm [shape: f32[8,8,32], index: 1, kind: input, shape index: {}]
  %s2 = inlined_call_operand.hbm [shape: s32[8,8], index: 2, kind: input, shape index: {}]
  %s3 = inlined_call_operand.hbm [shape: f32[8,8], index: 3, kind: output, shape index: {}]
  %s4 = sld [smem:[#allocation0]]
  $region34: #{tpu_custom_call.1} parent=0
    _
  %s6 = ssub.s32 1, %s4
  %s7 = scalar_select 0, %s6, %s4
  $region1: #{tpu_custom_call.1} parent=0
    #allocation2 [shape = 'u8[4096]{0}', space=vmem, size = 0x1000, scoped, tag = 'input window, operand 0, single buffered']
    #allocation3 [shape = 's32[1]{0}', space=sflag, size = 0x4, scoped, tag = 'scoped memory for tpu_custom_call.1']
    #allocation4 [shape = 's32[1]{0}', space=sflag, size = 0x4, scoped, tag = 'scoped memory for tpu_custom_call.1']
    #allocation5 [shape = 'u8[32768]{0}', space=vmem, size = 0x8000, scoped, tag = 'input window, operand 1, single buffered']
    #allocation6 [shape = 's32[1]{0}', space=sflag, size = 0x4, scoped, tag = 'scoped memory for tpu_custom_call.1']
    #allocation7 [shape = 'u8[4096]{0}', space=vmem, size = 0x1000, scoped, tag = 'input window, operand 2, single buffered']
    #allocation8 [shape = 'u8[4096]{0}', space=vmem, size = 0x1000, scoped, tag = 'output window, operand 0, single buffered']
    %8 = vsyncpa [#allocation3], 0
    %9 = vsyncpa [#allocation6], 0
    %10 = vsyncpa [#allocation4], 0
    // Predicated region
    $region2: #{tpu_custom_call.1} parent=1 // pred_check
      _
    $region3: #{tpu_custom_call.1} parent=1 // pred_check_branch
      %12 = sbr.rel (0) target = $region5
    $region4: #{tpu_custom_call.1} parent=1 // pred_region
      %14 = vsyncadd [#allocation3], 0
      %s16 = sshll.u32 %s0, 4
      %s17 = int_to_ptr.hbm [resolvable:$true] %s16
      %s18 = sshll.u32 [#allocation2], 4
      %s19 = int_to_ptr.vmem [resolvable:$true] %s18
      %21 = dma.hbm_to_vmem [thread:$0]  %s17, 128, %s19, [#allocation3]
    $region5: #{tpu_custom_call.1} parent=1 // pred_fallthru
      _
    // Predicated region
    $region6: #{tpu_custom_call.1} parent=1 // pred_check
      _
    $region7: #{tpu_custom_call.1} parent=1 // pred_check_branch
      %23 = sbr.rel (0) target = $region9
    $region8: #{tpu_custom_call.1} parent=1 // pred_region
      %25 = vsyncadd [#allocation6], 0
      %s26 = sshll.u32 %s1, 4
      %s27 = int_to_ptr.hbm [resolvable:$true] %s26
      %s28 = sshll.u32 [#allocation5], 4
      %s29 = int_to_ptr.vmem [resolvable:$true] %s28
      %34 = dma.hbm_to_vmem [thread:$0]  %s27, 1024, %s29, [#allocation6], 128, 128, 8
    $region9: #{tpu_custom_call.1} parent=1 // pred_fallthru
      _
    // Predicated region
    $region10: #{tpu_custom_call.1} parent=1 // pred_check
      _
    $region11: #{tpu_custom_call.1} parent=1 // pred_check_branch
      %36 = sbr.rel (0) target = $region13
    $region12: #{tpu_custom_call.1} parent=1 // pred_region
      %38 = vsyncadd [#allocation6], 0
      %s40 = sshll.u32 %s2, 4
      %s41 = int_to_ptr.hbm [resolvable:$true] %s40
      %s42 = sshll.u32 [#allocation7], 4
      %s43 = int_to_ptr.vmem [resolvable:$true] %s42
      %45 = dma.hbm_to_vmem [thread:$0]  %s41, 128, %s43, [#allocation6]
    $region13: #{tpu_custom_call.1} parent=1 // pred_fallthru
      _
    // Predicated region
    $region14: #{tpu_custom_call.1} parent=1 // pred_check
      _
    $region15: #{tpu_custom_call.1} parent=1 // pred_check_branch
      %47 = sbr.rel (0) target = $region17
    $region16: #{tpu_custom_call.1} parent=1 // pred_region
      %49 = dma.done [#allocation3], 128
    $region17: #{tpu_custom_call.1} parent=1 // pred_fallthru
      _
    // Predicated region
    $region18: #{tpu_custom_call.1} parent=1 // pred_check
      _
    $region19: #{tpu_custom_call.1} parent=1 // pred_check_branch
      %51 = sbr.rel (0) target = $region21
    $region20: #{tpu_custom_call.1} parent=1 // pred_region
      %53 = dma.done [#allocation6], 1024
    $region21: #{tpu_custom_call.1} parent=1 // pred_fallthru
      _
    // Predicated region
    $region22: #{tpu_custom_call.1} parent=1 // pred_check
      _
    $region23: #{tpu_custom_call.1} parent=1 // pred_check_branch
      %55 = sbr.rel (0) target = $region25
    $region24: #{tpu_custom_call.1} parent=1 // pred_region
      %57 = dma.done [#allocation6], 128
    $region25: #{tpu_custom_call.1} parent=1 // pred_fallthru
      _
    %v58 = vld [vmem:[#allocation7] sm:$0xff]
    %v59 = vld [vmem:[#allocation2] sm:$0xff]
    %v60 = vld [vmem:[#allocation5] sm:$0xff]
    %v61 = vld [vmem:[#allocation5 + $0x8] sm:$0xff]
    %v62 = vld [vmem:[#allocation5 + $0x10] sm:$0xff]
    %v63 = vld [vmem:[#allocation5 + $0x18] sm:$0xff]
    %v64 = vld [vmem:[#allocation5 + $0x20] sm:$0xff]
    %v65 = vld [vmem:[#allocation5 + $0x28] sm:$0xff]
    %v66 = vld [vmem:[#allocation5 + $0x30] sm:$0xff]
    %v67 = vld [vmem:[#allocation5 + $0x38] sm:$0xff]
    %v69 = vrot.slane %v59, 1
    %v70 = vrot.slane %v59, 2
    %v71 = vrot.slane %v59, 3
    %v72 = vrot.slane %v59, 4
    %v73 = vrot.slane %v59, 5
    %v74 = vrot.slane %v59, 6
    %v75 = vrot.slane %v59, 7
    %v76 = vperm.slane %v59, 0
    %v77 = vperm.slane %v69, 0
    %v78 = vperm.slane %v70, 0
    %v79 = vperm.slane %v71, 0
    %v80 = vperm.slane %v72, 0
    %v81 = vperm.slane %v73, 0
    %v82 = vperm.slane %v74, 0
    %v83 = vperm.slane %v75, 0
    %v92 = vmul.f32 %v76, %v60
    %v93 = vmul.f32 %v77, %v61
    %v94 = vmul.f32 %v78, %v62
    %v95 = vmul.f32 %v79, %v63
    %v96 = vmul.f32 %v80, %v64
    %v97 = vmul.f32 %v81, %v65
    %v98 = vmul.f32 %v82, %v66
    %v99 = vmul.f32 %v83, %v67
    %vm100 = vcmask 261120
    %v101 = vsel %vm100, %v92, 0.0
    %102 = vadd.xlane.f32.xlu0 %v101
    %v103 = vpop.xlane.xlu0 %102
    %v104 = vsel %vm100, %v93, 0.0
    %105 = vadd.xlane.f32.xlu0 %v104
    %v106 = vpop.xlane.xlu0 %105
    %v107 = vsel %vm100, %v94, 0.0
    %108 = vadd.xlane.f32.xlu0 %v107
    %v109 = vpop.xlane.xlu0 %108
    %v110 = vsel %vm100, %v95, 0.0
    %111 = vadd.xlane.f32.xlu0 %v110
    %v112 = vpop.xlane.xlu0 %111
    %v113 = vsel %vm100, %v96, 0.0
    %114 = vadd.xlane.f32.xlu0 %v113
    %v115 = vpop.xlane.xlu0 %114
    %v116 = vsel %vm100, %v97, 0.0
    %117 = vadd.xlane.f32.xlu0 %v116
    %v118 = vpop.xlane.xlu0 %117
    %v119 = vsel %vm100, %v98, 0.0
    %120 = vadd.xlane.f32.xlu0 %v119
    %v121 = vpop.xlane.xlu0 %120
    %v122 = vsel %vm100, %v99, 0.0
    %123 = vadd.xlane.f32.xlu0 %v122
    %v124 = vpop.xlane.xlu0 %123
    %v125 = vmul.f32 %v59, %v59
    %v126 = vsel %vm100, %v125, 0.0
    %127 = vadd.xlane.f32.xlu0 %v126
    %v128 = vpop.xlane.xlu0 %127
    %v129 = vmul.f32 %v60, %v60
    %v130 = vmul.f32 %v61, %v61
    %v131 = vmul.f32 %v62, %v62
    %v132 = vmul.f32 %v63, %v63
    %v133 = vmul.f32 %v64, %v64
    %v134 = vmul.f32 %v65, %v65
    %v135 = vmul.f32 %v66, %v66
    %v136 = vmul.f32 %v67, %v67
    %v137 = vsel %vm100, %v129, 0.0
    %138 = vadd.xlane.f32.xlu0 %v137
    %v139 = vpop.xlane.xlu0 %138
    %v140 = vsel %vm100, %v130, 0.0
    %141 = vadd.xlane.f32.xlu0 %v140
    %v142 = vpop.xlane.xlu0 %141
    %v143 = vsel %vm100, %v131, 0.0
    %144 = vadd.xlane.f32.xlu0 %v143
    %v145 = vpop.xlane.xlu0 %144
    %v146 = vsel %vm100, %v132, 0.0
    %147 = vadd.xlane.f32.xlu0 %v146
    %v148 = vpop.xlane.xlu0 %147
    %v149 = vsel %vm100, %v133, 0.0
    %150 = vadd.xlane.f32.xlu0 %v149
    %v151 = vpop.xlane.xlu0 %150
    %v152 = vsel %vm100, %v134, 0.0
    %153 = vadd.xlane.f32.xlu0 %v152
    %v154 = vpop.xlane.xlu0 %153
    %v155 = vsel %vm100, %v135, 0.0
    %156 = vadd.xlane.f32.xlu0 %v155
    %v157 = vpop.xlane.xlu0 %156
    %v158 = vsel %vm100, %v136, 0.0
    %159 = vadd.xlane.f32.xlu0 %v158
    %v160 = vpop.xlane.xlu0 %159
    %v169 = vlaneseq
    %v170 = vand.u32 %v169, 127
    %v171 = vperm.slane %v139, %v170
    %v172 = vperm.slane %v142, %v170
    %v173 = vperm.slane %v145, %v170
    %v174 = vperm.slane %v148, %v170
    %v175 = vperm.slane %v151, %v170
    %v176 = vperm.slane %v154, %v170
    %v177 = vperm.slane %v157, %v170
    %v178 = vperm.slane %v160, %v170
    %vm179 = vcmask 1041409
    %v180 = vsel %vm179, %v172, %v171
    %vm181 = vcmask 1042434
    %v182 = vsel %vm181, %v173, %v180
    %vm183 = vcmask 1043459
    %v184 = vsel %vm183, %v174, %v182
    %vm185 = vcmask 1044484
    %v186 = vsel %vm185, %v175, %v184
    %vm187 = vcmask 1045509
    %v188 = vsel %vm187, %v176, %v186
    %vm189 = vcmask 1046534
    %v190 = vsel %vm189, %v177, %v188
    %vm191 = vcmask 1047559
    %v192 = vsel %vm191, %v178, %v190
    %v194 = vmul.f32 %v128, %v192
    %v195 = vmax.f32 %v194, 1e-16
    %v196 = vrsqrt.pop %v195
    %v197 = vmul.f32 %v196, %v195
    %v198 = vmul.f32 %v197, %v196
    %v199 = vmul.f32 0.5, %v198
    %v200 = vsub.f32 1.5, %v199
    %v201 = vmul.f32 %v196, %v200
    %vm202 = vweird.f32 %v195
    %vm203 = vweird.f32 %v196
    %vm204 = vmor %vm202, %vm203
    %v205 = vsel %vm204, %v196, %v201
    %v207 = vperm.slane %v205, 0
    %v208 = vlaneseq
    %v209 = vshrl.u32 %v208, 7
    %211 = vset.pattern.permute.xlu0 %v209
    %212 = vperm.xlu0 %211, %v207
    %v213 = vpop.permute.xlu0 %212
    %v214 = vperm.slane %v205, 1
    %v215 = vlaneseq
    %v216 = vshrl.u32 %v215, 7
    %218 = vset.pattern.permute.xlu0 %v216
    %219 = vperm.xlu0 %218, %v214
    %v220 = vpop.permute.xlu0 %219
    %v221 = vperm.slane %v205, 2
    %v222 = vlaneseq
    %v223 = vshrl.u32 %v222, 7
    %225 = vset.pattern.permute.xlu0 %v223
    %226 = vperm.xlu0 %225, %v221
    %v227 = vpop.permute.xlu0 %226
    %v228 = vperm.slane %v205, 3
    %v229 = vlaneseq
    %v230 = vshrl.u32 %v229, 7
    %232 = vset.pattern.permute.xlu0 %v230
    %233 = vperm.xlu0 %232, %v228
    %v234 = vpop.permute.xlu0 %233
    %v235 = vperm.slane %v205, 4
    %v236 = vlaneseq
    %v237 = vshrl.u32 %v236, 7
    %239 = vset.pattern.permute.xlu0 %v237
    %240 = vperm.xlu0 %239, %v235
    %v241 = vpop.permute.xlu0 %240
    %v242 = vperm.slane %v205, 5
    %v243 = vlaneseq
    %v244 = vshrl.u32 %v243, 7
    %246 = vset.pattern.permute.xlu0 %v244
    %247 = vperm.xlu0 %246, %v242
    %v248 = vpop.permute.xlu0 %247
    %v249 = vperm.slane %v205, 6
    %v250 = vlaneseq
    %v251 = vshrl.u32 %v250, 7
    %253 = vset.pattern.permute.xlu0 %v251
    %254 = vperm.xlu0 %253, %v249
    %v255 = vpop.permute.xlu0 %254
    %v256 = vperm.slane %v205, 7
    %v257 = vlaneseq
    %v258 = vshrl.u32 %v257, 7
    %260 = vset.pattern.permute.xlu0 %v258
    %261 = vperm.xlu0 %260, %v256
    %v262 = vpop.permute.xlu0 %261
    %v271 = vmul.f32 %v103, %v213
    %v272 = vmul.f32 %v106, %v220
    %v273 = vmul.f32 %v109, %v227
    %v274 = vmul.f32 %v112, %v234
    %v275 = vmul.f32 %v115, %v241
    %v276 = vmul.f32 %v118, %v248
    %v277 = vmul.f32 %v121, %v255
    %v278 = vmul.f32 %v124, %v262
    %vm279 = vcmp.ne.s32.totalorder %v58, 0
    %288 = vset.pattern.permute.xlu0 0
    %289 = vperm.xlu0 %288, %v271
    %v290 = vpop.permute.xlu0 %289
    %291 = vset.pattern.permute.xlu0 0
    %292 = vperm.xlu0 %291, %v272
    %v293 = vpop.permute.xlu0 %292
    %294 = vset.pattern.permute.xlu0 0
    %295 = vperm.xlu0 %294, %v273
    %v296 = vpop.permute.xlu0 %295
    %297 = vset.pattern.permute.xlu0 0
    %298 = vperm.xlu0 %297, %v274
    %v299 = vpop.permute.xlu0 %298
    %300 = vset.pattern.permute.xlu0 0
    %301 = vperm.xlu0 %300, %v275
    %v302 = vpop.permute.xlu0 %301
    %303 = vset.pattern.permute.xlu0 0
    %304 = vperm.xlu0 %303, %v276
    %v305 = vpop.permute.xlu0 %304
    %306 = vset.pattern.permute.xlu0 0
    %307 = vperm.xlu0 %306, %v277
    %v308 = vpop.permute.xlu0 %307
    %309 = vset.pattern.permute.xlu0 0
    %310 = vperm.xlu0 %309, %v278
    %v311 = vpop.permute.xlu0 %310
    %v312 = vperm.slane %v290, %v170
    %v313 = vperm.slane %v293, %v170
    %v314 = vperm.slane %v296, %v170
    %v315 = vperm.slane %v299, %v170
    %v316 = vperm.slane %v302, %v170
    %v317 = vperm.slane %v305, %v170
    %v318 = vperm.slane %v308, %v170
    %v319 = vperm.slane %v311, %v170
    %v320 = vsel %vm179, %v313, %v312
    %v321 = vsel %vm181, %v314, %v320
    %v322 = vsel %vm183, %v315, %v321
    %v323 = vsel %vm185, %v316, %v322
    %v324 = vsel %vm187, %v317, %v323
    %v325 = vsel %vm189, %v318, %v324
    %v326 = vsel %vm191, %v319, %v325
    %v328 = vsel %vm279, -1.0, %v326
    %v329 = vadd.f32 %v328, 1.0
    %v330 = vmul.f32 %v329, 0.5
    %vm331 = vcmask 64512
    %332 = vst.msk [vmem:[#allocation8] sm:$0xff] %vm331, %v330
    // Predicated region
    $region26: #{tpu_custom_call.1} parent=1 // pred_check
      _
    $region27: #{tpu_custom_call.1} parent=1 // pred_check_branch
      %334 = sbr.rel (0) target = $region29
    $region28: #{tpu_custom_call.1} parent=1 // pred_region
      %336 = vsyncadd [#allocation4], 0
      %s338 = sshll.u32 [#allocation8], 4
      %s339 = int_to_ptr.vmem [resolvable:$true] %s338
      %s340 = sshll.u32 %s3, 4
      %s341 = int_to_ptr.hbm [resolvable:$true] %s340
      %343 = dma.vmem_to_hbm [thread:$0]  %s339, 128, %s341, [#allocation4]
    $region29: #{tpu_custom_call.1} parent=1 // pred_fallthru
      _
    // Predicated region
    $region30: #{tpu_custom_call.1} parent=1 // pred_check
      _
    $region31: #{tpu_custom_call.1} parent=1 // pred_check_branch
      %345 = sbr.rel (0) target = $region33
    $region32: #{tpu_custom_call.1} parent=1 // pred_region
      %347 = dma.done [#allocation4], 128
    $region33: #{tpu_custom_call.1} parent=1 // pred_fallthru
      _
    %348 = vsyncpa [#allocation3], 1
    %349 = vsyncpa [#allocation6], 1
    %350 = vsyncpa [#allocation4], 1

</llo_original>
